<compile_context>
chip_gen: v5e
topology: v5e:2x2
jax: 0.10.0
libtpu: 0.0.40
codegen_flags: <defaults>
</compile_context>

<pallas_src>
import functools

import jax
import jax.numpy as jnp
import numpy as np
from jax.experimental import pallas as pl
from jax.experimental.pallas import tpu as pltpu

IN_FEATURES = 784
HIDDEN = 512


def _round_up(n, m):
    return ((n + m - 1) // m) * m


def _pick_tb(batch, tb):
    """Batch tile: sublane-aligned, multiple of 256 for clean MXU M tiling, and
    >=2 grid steps whenever B allows so both v7x TensorCores get work."""
    if batch <= 256:
        return _round_up(batch, 8)
    return min(tb, _round_up(pl.cdiv(batch, 2), 256))


def _discriminator_kernel(x_ref, w1_ref, b1_ref, w2_ref, b2_ref, o_ref):
    # x_ref : (TB, 784)  f32   batch tile, streamed straight from HBM
    # w1_ref: (784, 512) bf16  resident across the grid (constant index_map)
    # b1_ref: (1, 512)   f32
    # w2_ref: (1, 512)   f32   fc2 weight laid out as a row
    # b2_ref: (1, 1)     f32
    # o_ref : (TB, 1)    f32
    # fc1 on the MXU: cast the x tile to bf16 in VMEM (HBM read stays a single f32
    # pass), f32 accumulation.
    x_bf = x_ref[...].astype(jnp.bfloat16)
    h = jnp.dot(x_bf, w1_ref[...], preferred_element_type=jnp.float32)
    h = h + b1_ref[...]
    # LeakyReLU(0.1) in f32 on the VPU.
    h = jnp.maximum(h, 0.1 * h)
    # fc2 has N=1: multiply + lane reduction rides the VPU/XLU slots that are idle
    # while the fc1 matmul owns the MXU.
    z = jnp.sum(h * w2_ref[...], axis=-1, keepdims=True) + b2_ref[...]
    # Sigmoid: exp + reciprocal both land on the EUP slot.
    # NOTE: bf16 matmul inputs + approx reciprocal => ~1e-2 rel error vs f32 torch.
    o_ref[...] = pl.reciprocal(1.0 + jnp.exp(-z), approx=True)


def prepare_params(w1, b1, w2, b2):
    """One-time parameter prep (keep out of the per-call path).
    w1: (784, 512), b1: (512,), w2: (512, 1), b2: (1,)."""
    w1_bf = jnp.asarray(w1, jnp.bfloat16)                        # (784, 512)
    b1_row = jnp.asarray(b1, jnp.float32).reshape(1, HIDDEN)     # (1, 512)
    w2_row = jnp.asarray(w2, jnp.float32).reshape(1, HIDDEN)     # (1, 512)
    b2_s = jnp.asarray(b2, jnp.float32).reshape(1, 1)            # (1, 1)
    return w1_bf, b1_row, w2_row, b2_s


@functools.partial(jax.jit, static_argnames=("tb",))
def discriminator_forward(x, w1_bf, b1_row, w2_row, b2_s, *, tb=1024):
    """x: any shape flattening to (B, 784). Returns (B, 1) float32 = sigmoid(fc2(lrelu(fc1(x))))."""
    x2d = x.reshape(-1, IN_FEATURES).astype(jnp.float32)
    B = x2d.shape[0]

    TB = _pick_tb(B, tb)
    grid = (pl.cdiv(B, TB),)   # partial trailing block is masked on writeback

    extra = {}
    if TB > 1024:
        # v5e's default scoped-VMEM limit (16 MiB) is too tight past TB=1024.
        extra["vmem_limit_bytes"] = 40 * 1024 * 1024

    out = pl.pallas_call(
        _discriminator_kernel,
        out_shape=jax.ShapeDtypeStruct((B, 1), jnp.float32),
        grid=grid,
        in_specs=[
            # x tile, auto double-buffered/pipelined; full K (= array last dim) block.
            pl.BlockSpec((TB, IN_FEATURES), lambda i: (i, 0)),
            # weights/biases: constant index_map -> fetched once, VMEM-resident.
            pl.BlockSpec((IN_FEATURES, HIDDEN), lambda i: (0, 0)),
            pl.BlockSpec((1, HIDDEN), lambda i: (0, 0)),
            pl.BlockSpec((1, HIDDEN), lambda i: (0, 0)),
            pl.BlockSpec((1, 1), lambda i: (0, 0)),
        ],
        out_specs=pl.BlockSpec((TB, 1), lambda i: (i, 0)),
        compiler_params=pltpu.CompilerParams(
            dimension_semantics=("parallel",),  # batch axis shards across v7x's 2 TCs
            **extra),
    )(x2d, w1_bf, b1_row, w2_row, b2_s)

    return out


def init_params(key):
    """Deterministic init mimicking PyTorch nn.Linear default (U[-1/sqrt(fan_in), +])."""
    k1, k2, k3, k4 = jax.random.split(key, 4)
    bound1 = 1.0 / np.sqrt(784.0)
    bound2 = 1.0 / np.sqrt(512.0)
    # stored pre-transposed: (in_features, out_features)
    w1 = jax.random.uniform(k1, (784, 512), jnp.float32, -bound1, bound1)
    b1 = jax.random.uniform(k2, (512,), jnp.float32, -bound1, bound1)
    w2 = jax.random.uniform(k3, (512, 1), jnp.float32, -bound2, bound2)
    b2 = jax.random.uniform(k4, (1,), jnp.float32, -bound2, bound2)
    return w1, b1, w2, b2


if __name__ == "__main__":
    key = jax.random.PRNGKey(0)
    pkey, xkey = jax.random.split(key)

    w1, b1, w2, b2 = init_params(pkey)
    params = prepare_params(w1, b1, w2, b2)   # done once, outside the per-call path

    # Example input: batch of 2 MNIST-like images, NCHW.
    x = jax.random.normal(xkey, (2, 1, 28, 28), jnp.float32)

    out = discriminator_forward(x, *params)
    out = jax.block_until_ready(out)

    # f32 reference (kernel uses bf16 matmul inputs + approx reciprocal -> loosened tolerance).
    h_ref = x.reshape(-1, 784) @ w1 + b1
    h_ref = jnp.where(h_ref > 0, h_ref, 0.1 * h_ref)
    ref = jax.nn.sigmoid(h_ref @ w2 + b2)
    np.testing.assert_allclose(np.asarray(out), np.asarray(ref), rtol=2e-2, atol=2e-2)

    assert out.shape == (2, 1)
    print("KERNEL_OK")
</pallas_src>

<mosaic_0001>
module attributes {stable_mosaic.version = 11 : i64} {
  func.func @_discriminator_kernel(%arg0: i32, %arg1: memref<8x784xf32, #tpu.memory_space<vmem>>, %arg2: memref<784x512xbf16, #tpu.memory_space<vmem>>, %arg3: memref<1x512xf32, #tpu.memory_space<vmem>>, %arg4: memref<1x512xf32, #tpu.memory_space<vmem>>, %arg5: memref<1x1xf32, #tpu.memory_space<vmem>>, %arg6: memref<8x1xf32, #tpu.memory_space<vmem>>) attributes {dimension_semantics = [#tpu.dimension_semantics<parallel>], iteration_bounds = array<i64: 1>, scalar_prefetch = 0 : i64, scratch_operands = 0 : i64, tpu.core_type = #tpu.core_type<tc>, window_params = [{transform_indices = @transform_0, window_bounds = array<i64: 8, 784>}, {pipeline_mode = #tpu.pipeline_mode<synchronous>, transform_indices = @transform_1, window_bounds = array<i64: 784, 512>}, {pipeline_mode = #tpu.pipeline_mode<synchronous>, transform_indices = @transform_2, window_bounds = array<i64: 1, 512>}, {pipeline_mode = #tpu.pipeline_mode<synchronous>, transform_indices = @transform_3, window_bounds = array<i64: 1, 512>}, {pipeline_mode = #tpu.pipeline_mode<synchronous>, transform_indices = @transform_4, window_bounds = array<i64: 1, 1>}, {transform_indices = @transform_5, window_bounds = array<i64: 8, 1>}]} {
    %c0 = arith.constant 0 : index
    %c0_0 = arith.constant 0 : index
    %0 = vector.load %arg1[%c0, %c0_0] : memref<8x784xf32, #tpu.memory_space<vmem>>, vector<8x784xf32>
    %1 = arith.truncf %0 : vector<8x784xf32> to vector<8x784xbf16>
    %c0_1 = arith.constant 0 : index
    %c0_2 = arith.constant 0 : index
    %2 = vector.load %arg2[%c0_1, %c0_2] : memref<784x512xbf16, #tpu.memory_space<vmem>>, vector<784x512xbf16>
    %cst = arith.constant dense<0.000000e+00> : vector<8x512xf32>
    %3 = tpu.matmul %1, %2, %cst {dimension_numbers = #tpu.dot_dimension_numbers<[1], [0], [0], [1], [0, 0, 1, 1], [], []>} : vector<8x784xbf16>, vector<784x512xbf16>, vector<8x512xf32> -> vector<8x512xf32>
    %c0_3 = arith.constant 0 : index
    %c0_4 = arith.constant 0 : index
    %4 = vector.load %arg3[%c0_3, %c0_4] : memref<1x512xf32, #tpu.memory_space<vmem>>, vector<1x512xf32>
    %5 = vector.broadcast %4 : vector<1x512xf32> to vector<8x512xf32>
    %6 = arith.addf %3, %5 : vector<8x512xf32>
    %cst_5 = arith.constant 1.000000e-01 : f32
    %7 = vector.broadcast %cst_5 : f32 to vector<8x512xf32>
    %8 = arith.mulf %7, %6 : vector<8x512xf32>
    %9 = arith.maximumf %6, %8 : vector<8x512xf32>
    %c0_6 = arith.constant 0 : index
    %c0_7 = arith.constant 0 : index
    %10 = vector.load %arg4[%c0_6, %c0_7] : memref<1x512xf32, #tpu.memory_space<vmem>>, vector<1x512xf32>
    %11 = vector.broadcast %10 : vector<1x512xf32> to vector<8x512xf32>
    %12 = arith.mulf %9, %11 : vector<8x512xf32>
    %cst_8 = arith.constant dense<0.000000e+00> : vector<8xf32>
    %13 = vector.multi_reduction <add>, %12, %cst_8 [1] : vector<8x512xf32> to vector<8xf32>
    %14 = vector.shape_cast %13 : vector<8xf32> to vector<8x1xf32>
    %c0_9 = arith.constant 0 : index
    %c0_10 = arith.constant 0 : index
    %15 = vector.load %arg5[%c0_9, %c0_10] : memref<1x1xf32, #tpu.memory_space<vmem>>, vector<1x1xf32>
    %16 = vector.broadcast %15 : vector<1x1xf32> to vector<8x1xf32>
    %17 = arith.addf %14, %16 : vector<8x1xf32>
    %cst_11 = arith.constant 0.000000e+00 : f32
    %18 = vector.broadcast %cst_11 : f32 to vector<8x1xf32>
    %19 = arith.subf %18, %17 : vector<8x1xf32>
    %20 = math.exp %19 : vector<8x1xf32>
    %cst_12 = arith.constant 1.000000e+00 : f32
    %21 = vector.broadcast %cst_12 : f32 to vector<8x1xf32>
    %22 = arith.addf %21, %20 : vector<8x1xf32>
    %23 = tpu.reciprocal %22 {approx = true} : vector<8x1xf32> -> vector<8x1xf32>
    %c0_13 = arith.constant 0 : index
    %c0_14 = arith.constant 0 : index
    %24 = vector.load %arg6[%c0_13, %c0_14] : memref<8x1xf32, #tpu.memory_space<vmem>>, vector<8x1xf32>
    tpu.vector_store %arg6[%c0_13, %c0_14], %23 {strides = array<i32>} : memref<8x1xf32, #tpu.memory_space<vmem>>, vector<8x1xf32>,
    return
  }
  func.func @transform_0(%arg0: i32) -> (i32, i32) {
    %c0_i32 = arith.constant 0 : i32
    %c0_i32_0 = arith.constant 0 : i32
    return %arg0, %c0_i32 : i32, i32
  }
  func.func @transform_1(%arg0: i32) -> (i32, i32) {
    %c0_i32 = arith.constant 0 : i32
    %c0_i32_0 = arith.constant 0 : i32
    %c0_i32_1 = arith.constant 0 : i32
    return %c0_i32, %c0_i32_0 : i32, i32
  }
  func.func @transform_2(%arg0: i32) -> (i32, i32) {
    %c0_i32 = arith.constant 0 : i32
    %c0_i32_0 = arith.constant 0 : i32
    %c0_i32_1 = arith.constant 0 : i32
    return %c0_i32, %c0_i32_0 : i32, i32
  }
  func.func @transform_3(%arg0: i32) -> (i32, i32) {
    %c0_i32 = arith.constant 0 : i32
    %c0_i32_0 = arith.constant 0 : i32
    %c0_i32_1 = arith.constant 0 : i32
    return %c0_i32, %c0_i32_0 : i32, i32
  }
  func.func @transform_4(%arg0: i32) -> (i32, i32) {
    %c0_i32 = arith.constant 0 : i32
    %c0_i32_0 = arith.constant 0 : i32
    %c0_i32_1 = arith.constant 0 : i32
    return %c0_i32, %c0_i32_0 : i32, i32
  }
  func.func @transform_5(%arg0: i32) -> (i32, i32) {
    %c0_i32 = arith.constant 0 : i32
    %c0_i32_0 = arith.constant 0 : i32
    return %arg0, %c0_i32 : i32, i32
  }
}

</mosaic_0001>

<llo_original>
// kernel: discriminator_forward.1
$region0: #{discriminator_forward.1}
  #allocation0 [shape = 'u32[]', space=smem, size = 0x4, offset = 0x4, fixed_abs, tag = 'smem constant byte address 0x4 - core index']
  #allocation1 [shape = 'u32[72,128]{1,0:T(1,128)}', space=vmem, size = 0x9000, scoped, tag = 'internal scratch']
  #allocation2 [shape = 'f32[1,1]{1,0:T(1,128)S(1)}', space=vmem, size = 0x200, scoped, tag = 'scoped memory for discriminator_forward.1']
  %s0 = inlined_call_operand.vmem [shape: f32[2,784], index: 0, kind: input, shape index: {}]
  %s1 = inlined_call_operand.hbm [shape: bf16[784,512], index: 1, kind: input, shape index: {}]
  %s2 = inlined_call_operand.vmem [shape: f32[1,512], index: 2, kind: input, shape index: {}]
  %s3 = inlined_call_operand.vmem [shape: f32[1,512], index: 3, kind: input, shape index: {}]
  %s4 = inlined_call_operand.<no memory space> [shape: f32[1,1], index: 4, kind: input, shape index: {}]
  %s5 = inlined_call_operand.vmem [shape: f32[2,1], index: 5, kind: output, shape index: {}]
  %s6 = sld [smem:[#allocation0]]
  $region64: #{discriminator_forward.1} parent=0
    _
  %s8 = ssub.s32 1, %s6
  %s9 = scalar_select 0, %s8, %s6
  %v10 = vstv %s4
  %11 = vst [vmem:[#allocation2] sm:$0x1] %v10
  $region1: #{discriminator_forward.1} parent=0
    #allocation3 [shape = 'u8[802816]{0}', space=vmem, size = 0xc4000, scoped, tag = 'input window, operand 1, single buffered']
    #allocation4 [shape = 's32[1]{0}', space=sflag, size = 0x4, scoped, tag = 'scoped memory for discriminator_forward.1']
    #allocation5 [shape = 'u8[4096]{0}', space=vmem, size = 0x1000, scoped, tag = 'output window, operand 0, single buffered']
    %12 = vsyncpa [#allocation4], 0
    // Predicated region
    $region2: #{discriminator_forward.1} parent=1 // pred_check
      _
    $region3: #{discriminator_forward.1} parent=1 // pred_check_branch
      %14 = sbr.rel (0) target = $region5
    $region4: #{discriminator_forward.1} parent=1 // pred_region
      _
    $region5: #{discriminator_forward.1} parent=1 // pred_fallthru
      _
    // Predicated region
    $region6: #{discriminator_forward.1} parent=1 // pred_check
      _
    $region7: #{discriminator_forward.1} parent=1 // pred_check_branch
      %16 = sbr.rel (0) target = $region9
    $region8: #{discriminator_forward.1} parent=1 // pred_region
      %18 = vsyncadd [#allocation4], 0
      %s19 = sshll.u32 %s1, 4
      %s20 = int_to_ptr.hbm [resolvable:$true] %s19
      %s21 = sshll.u32 [#allocation3], 4
      %s22 = int_to_ptr.vmem [resolvable:$true] %s21
      %27 = dma.hbm_to_vmem [thread:$0]  %s20, 25088, %s22, [#allocation4], 256, 256, 16
    $region9: #{discriminator_forward.1} parent=1 // pred_fallthru
      _
    // Predicated region
    $region10: #{discriminator_forward.1} parent=1 // pred_check
      _
    $region11: #{discriminator_forward.1} parent=1 // pred_check_branch
      %29 = sbr.rel (0) target = $region13
    $region12: #{discriminator_forward.1} parent=1 // pred_region
      _
    $region13: #{discriminator_forward.1} parent=1 // pred_fallthru
      _
    // Predicated region
    $region14: #{discriminator_forward.1} parent=1 // pred_check
      _
    $region15: #{discriminator_forward.1} parent=1 // pred_check_branch
      %31 = sbr.rel (0) target = $region17
    $region16: #{discriminator_forward.1} parent=1 // pred_region
      _
    $region17: #{discriminator_forward.1} parent=1 // pred_fallthru
      _
    // Predicated region
    $region18: #{discriminator_forward.1} parent=1 // pred_check
      _
    $region19: #{discriminator_forward.1} parent=1 // pred_check_branch
      %33 = sbr.rel (0) target = $region21
    $region20: #{discriminator_forward.1} parent=1 // pred_region
      _
    $region21: #{discriminator_forward.1} parent=1 // pred_fallthru
      _
    // Predicated region
    $region22: #{discriminator_forward.1} parent=1 // pred_check
      _
    $region23: #{discriminator_forward.1} parent=1 // pred_check_branch
      %35 = sbr.rel (0) target = $region25
    $region24: #{discriminator_forward.1} parent=1 // pred_region
      %37 = dma.done [#allocation4], 25088
    $region25: #{discriminator_forward.1} parent=1 // pred_fallthru
      _
    %v39 = vld [vmem:[%s0] sm:$0xff]
    %v40 = vld [vmem:[%s0 + $0x8] sm:$0x3f]
    %v41 = vld [vmem:[%s0 + $0xe] sm:$0xff]
    %v42 = vld [vmem:[%s0 + $0x16] sm:$0x3f]
    %v43 = vld [vmem:[%s0 + $0x1c] sm:$0xff]
    %v44 = vld [vmem:[%s0 + $0x24] sm:$0x3f]
    %v45 = vld [vmem:[%s0 + $0x2a] sm:$0xff]
    %v46 = vld [vmem:[%s0 + $0x32] sm:$0x3f]
    %55 = vst [vmem:[#allocation1] ss:$4 sm:$0xff] %v39
    %s56 = scalar_lea.vmem [#allocation1], 1
    %57 = vst [vmem:[%s56] ss:$4 sm:$0xff] %v41
    %s58 = scalar_lea.vmem [#allocation1], 2
    %59 = vst [vmem:[%s58] ss:$4 sm:$0xff] %v43
    %s60 = scalar_lea.vmem [#allocation1], 3
    %61 = vst [vmem:[%s60] ss:$4 sm:$0xff] %v45
    %s62 = scalar_lea.vmem [#allocation1], 32
    %63 = vst [vmem:[%s62] ss:$4 sm:$0xff] %v40
    %s64 = scalar_lea.vmem [#allocation1], 33
    %65 = vst [vmem:[%s64] ss:$4 sm:$0xff] %v42
    %s66 = scalar_lea.vmem [#allocation1], 34
    %67 = vst [vmem:[%s66] ss:$4 sm:$0xff] %v44
    %s68 = scalar_lea.vmem [#allocation1], 35
    %69 = vst [vmem:[%s68] ss:$4 sm:$0xff] %v46
    %v70 = vld.sshfl [vmem:[#allocation1] sm:$0xff pattern:$0x73625140]
    %v71 = vld.sshfl [vmem:[#allocation1 + $0x8] sm:$0xff pattern:$0x73625140]
    %v72 = vld.sshfl [vmem:[#allocation1 + $0x10] sm:$0xff pattern:$0x73625140]
    %v73 = vld.sshfl [vmem:[#allocation1 + $0x18] sm:$0xff pattern:$0x73625140]
    %v74 = vld.sshfl [vmem:[#allocation1 + $0x20] sm:$0xff pattern:$0x73625140]
    %v75 = vld.sshfl [vmem:[#allocation1 + $0x28] sm:$0xff pattern:$0x73625140]
    %v76 = vld.sshfl [vmem:[#allocation1 + $0x30] sm:$0xff pattern:$0x73625140]
    %v84 = vpack.c.bf16 %v70, %v70
    %v85 = vpack.c.bf16 %v71, %v71
    %v86 = vpack.c.bf16 %v72, %v72
    %v87 = vpack.c.bf16 %v73, %v73
    %v88 = vpack.c.bf16 %v74, %v74
    %v89 = vpack.c.bf16 %v75, %v75
    %v90 = vpack.c.bf16 %v76, %v76
    %v91 = vld [vmem:[#allocation3] sm:$0xff]
    %v92 = vld [vmem:[#allocation3 + $0x8] sm:$0xff]
    %v93 = vld [vmem:[#allocation3 + $0x10] sm:$0xff]
    %v94 = vld [vmem:[#allocation3 + $0x18] sm:$0xff]
    %v95 = vld [vmem:[#allocation3 + $0x20] sm:$0xff]
    %v96 = vld [vmem:[#allocation3 + $0x28] sm:$0xff]
    %v97 = vld [vmem:[#allocation3 + $0x30] sm:$0xff]
    %v98 = vld [vmem:[#allocation3 + $0x38] sm:$0xff]
    %v99 = vld [vmem:[#allocation3 + $0x40] sm:$0xff]
    %v100 = vld [vmem:[#allocation3 + $0x48] sm:$0xff]
    %v101 = vld [vmem:[#allocation3 + $0x50] sm:$0xff]
    %v102 = vld [vmem:[#allocation3 + $0x58] sm:$0xff]
    %v103 = vld [vmem:[#allocation3 + $0x60] sm:$0xff]
    %v104 = vld [vmem:[#allocation3 + $0x68] sm:$0xff]
    %v105 = vld [vmem:[#allocation3 + $0x70] sm:$0xff]
    %v106 = vld [vmem:[#allocation3 + $0x78] sm:$0xff]
    %v107 = vld [vmem:[#allocation3 + $0x80] sm:$0xff]
    %v108 = vld [vmem:[#allocation3 + $0x88] sm:$0xff]
    %v109 = vld [vmem:[#allocation3 + $0x90] sm:$0xff]
    %v110 = vld [vmem:[#allocation3 + $0x98] sm:$0xff]
    %v111 = vld [vmem:[#allocation3 + $0xa0] sm:$0xff]
    %v112 = vld [vmem:[#allocation3 + $0xa8] sm:$0xff]
    %v113 = vld [vmem:[#allocation3 + $0xb0] sm:$0xff]
    %v114 = vld [vmem:[#allocation3 + $0xb8] sm:$0xff]
    %v115 = vld [vmem:[#allocation3 + $0xc0] sm:$0xff]
    %v116 = vld [vmem:[#allocation3 + $0xc8] sm:$0xff]
    %v117 = vld [vmem:[#allocation3 + $0xd0] sm:$0xff]
    %v118 = vld [vmem:[#allocation3 + $0xd8] sm:$0xff]
    %v119 = vld [vmem:[#allocation3 + $0xe0] sm:$0xff]
    %v120 = vld [vmem:[#allocation3 + $0xe8] sm:$0xff]
    %v121 = vld [vmem:[#allocation3 + $0xf0] sm:$0xff]
    %v122 = vld [vmem:[#allocation3 + $0xf8] sm:$0xff]
    %v123 = vld [vmem:[#allocation3 + $0x100] sm:$0xff]
    %v124 = vld [vmem:[#allocation3 + $0x108] sm:$0xff]
    %v125 = vld [vmem:[#allocation3 + $0x110] sm:$0xff]
    %v126 = vld [vmem:[#allocation3 + $0x118] sm:$0xff]
    %v127 = vld [vmem:[#allocation3 + $0x120] sm:$0xff]
    %v128 = vld [vmem:[#allocation3 + $0x128] sm:$0xff]
    %v129 = vld [vmem:[#allocation3 + $0x130] sm:$0xff]
    %v130 = vld [vmem:[#allocation3 + $0x138] sm:$0xff]
    %v131 = vld [vmem:[#allocation3 + $0x140] sm:$0xff]
    %v132 = vld [vmem:[#allocation3 + $0x148] sm:$0xff]
    %v133 = vld [vmem:[#allocation3 + $0x150] sm:$0xff]
    %v134 = vld [vmem:[#allocation3 + $0x158] sm:$0xff]
    %v135 = vld [vmem:[#allocation3 + $0x160] sm:$0xff]
    %v136 = vld [vmem:[#allocation3 + $0x168] sm:$0xff]
    %v137 = vld [vmem:[#allocation3 + $0x170] sm:$0xff]
    %v138 = vld [vmem:[#allocation3 + $0x178] sm:$0xff]
    %v139 = vld [vmem:[#allocation3 + $0x180] sm:$0xff]
    %v140 = vld [vmem:[#allocation3 + $0x188] sm:$0xff]
    %v141 = vld [vmem:[#allocation3 + $0x190] sm:$0xff]
    %v142 = vld [vmem:[#allocation3 + $0x198] sm:$0xff]
    %v143 = vld [vmem:[#allocation3 + $0x1a0] sm:$0xff]
    %v144 = vld [vmem:[#allocation3 + $0x1a8] sm:$0xff]
    %v145 = vld [vmem:[#allocation3 + $0x1b0] sm:$0xff]
    %v146 = vld [vmem:[#allocation3 + $0x1b8] sm:$0xff]
    %v147 = vld [vmem:[#allocation3 + $0x1c0] sm:$0xff]
    %v148 = vld [vmem:[#allocation3 + $0x1c8] sm:$0xff]
    %v149 = vld [vmem:[#allocation3 + $0x1d0] sm:$0xff]
    %v150 = vld [vmem:[#allocation3 + $0x1d8] sm:$0xff]
    %v151 = vld [vmem:[#allocation3 + $0x1e0] sm:$0xff]
    %v152 = vld [vmem:[#allocation3 + $0x1e8] sm:$0xff]
    %v153 = vld [vmem:[#allocation3 + $0x1f0] sm:$0xff]
    %v154 = vld [vmem:[#allocation3 + $0x1f8] sm:$0xff]
    %v155 = vld [vmem:[#allocation3 + $0x200] sm:$0xff]
    %v156 = vld [vmem:[#allocation3 + $0x208] sm:$0xff]
    %v157 = vld [vmem:[#allocation3 + $0x210] sm:$0xff]
    %v158 = vld [vmem:[#allocation3 + $0x218] sm:$0xff]
    %v159 = vld [vmem:[#allocation3 + $0x220] sm:$0xff]
    %v160 = vld [vmem:[#allocation3 + $0x228] sm:$0xff]
    %v161 = vld [vmem:[#allocation3 + $0x230] sm:$0xff]
    %v162 = vld [vmem:[#allocation3 + $0x238] sm:$0xff]
    %v163 = vld [vmem:[#allocation3 + $0x240] sm:$0xff]
    %v164 = vld [vmem:[#allocation3 + $0x248] sm:$0xff]
    %v165 = vld [vmem:[#allocation3 + $0x250] sm:$0xff]
    %v166 = vld [vmem:[#allocation3 + $0x258] sm:$0xff]
    %v167 = vld [vmem:[#allocation3 + $0x260] sm:$0xff]
    %v168 = vld [vmem:[#allocation3 + $0x268] sm:$0xff]
    %v169 = vld [vmem:[#allocation3 + $0x270] sm:$0xff]
    %v170 = vld [vmem:[#allocation3 + $0x278] sm:$0xff]
    %v171 = vld [vmem:[#allocation3 + $0x280] sm:$0xff]
    %v172 = vld [vmem:[#allocation3 + $0x288] sm:$0xff]
    %v173 = vld [vmem:[#allocation3 + $0x290] sm:$0xff]
    %v174 = vld [vmem:[#allocation3 + $0x298] sm:$0xff]
    %v175 = vld [vmem:[#allocation3 + $0x2a0] sm:$0xff]
    %v176 = vld [vmem:[#allocation3 + $0x2a8] sm:$0xff]
    %v177 = vld [vmem:[#allocation3 + $0x2b0] sm:$0xff]
    %v178 = vld [vmem:[#allocation3 + $0x2b8] sm:$0xff]
    %v179 = vld [vmem:[#allocation3 + $0x2c0] sm:$0xff]
    %v180 = vld [vmem:[#allocation3 + $0x2c8] sm:$0xff]
    %v181 = vld [vmem:[#allocation3 + $0x2d0] sm:$0xff]
    %v182 = vld [vmem:[#allocation3 + $0x2d8] sm:$0xff]
    %v183 = vld [vmem:[#allocation3 + $0x2e0] sm:$0xff]
    %v184 = vld [vmem:[#allocation3 + $0x2e8] sm:$0xff]
    %v185 = vld [vmem:[#allocation3 + $0x2f0] sm:$0xff]
    %v186 = vld [vmem:[#allocation3 + $0x2f8] sm:$0xff]
    %v187 = vld [vmem:[#allocation3 + $0x300] sm:$0xff]
    %v188 = vld [vmem:[#allocation3 + $0x308] sm:$0xff]
    %v189 = vld [vmem:[#allocation3 + $0x310] sm:$0xff]
    %v190 = vld [vmem:[#allocation3 + $0x318] sm:$0xff]
    %v191 = vld [vmem:[#allocation3 + $0x320] sm:$0xff]
    %v192 = vld [vmem:[#allocation3 + $0x328] sm:$0xff]
    %v193 = vld [vmem:[#allocation3 + $0x330] sm:$0xff]
    %v194 = vld [vmem:[#allocation3 + $0x338] sm:$0xff]
    %v195 = vld [vmem:[#allocation3 + $0x340] sm:$0xff]
    %v196 = vld [vmem:[#allocation3 + $0x348] sm:$0xff]
    %v197 = vld [vmem:[#allocation3 + $0x350] sm:$0xff]
    %v198 = vld [vmem:[#allocation3 + $0x358] sm:$0xff]
    %v199 = vld [vmem:[#allocation3 + $0x360] sm:$0xff]
    %v200 = vld [vmem:[#allocation3 + $0x368] sm:$0xff]
    %v201 = vld [vmem:[#allocation3 + $0x370] sm:$0xff]
    %v202 = vld [vmem:[#allocation3 + $0x378] sm:$0xff]
    %v203 = vld [vmem:[#allocation3 + $0x380] sm:$0xff]
    %v204 = vld [vmem:[#allocation3 + $0x388] sm:$0xff]
    %v205 = vld [vmem:[#allocation3 + $0x390] sm:$0xff]
    %v206 = vld [vmem:[#allocation3 + $0x398] sm:$0xff]
    %v207 = vld [vmem:[#allocation3 + $0x3a0] sm:$0xff]
    %v208 = vld [vmem:[#allocation3 + $0x3a8] sm:$0xff]
    %v209 = vld [vmem:[#allocation3 + $0x3b0] sm:$0xff]
    %v210 = vld [vmem:[#allocation3 + $0x3b8] sm:$0xff]
    %v211 = vld [vmem:[#allocation3 + $0x3c0] sm:$0xff]
    %v212 = vld [vmem:[#allocation3 + $0x3c8] sm:$0xff]
    %v213 = vld [vmem:[#allocation3 + $0x3d0] sm:$0xff]
    %v214 = vld [vmem:[#allocation3 + $0x3d8] sm:$0xff]
    %v215 = vld [vmem:[#allocation3 + $0x3e0] sm:$0xff]
    %v216 = vld [vmem:[#allocation3 + $0x3e8] sm:$0xff]
    %v217 = vld [vmem:[#allocation3 + $0x3f0] sm:$0xff]
    %v218 = vld [vmem:[#allocation3 + $0x3f8] sm:$0xff]
    %v219 = vld [vmem:[#allocation3 + $0x400] sm:$0xff]
    %v220 = vld [vmem:[#allocation3 + $0x408] sm:$0xff]
    %v221 = vld [vmem:[#allocation3 + $0x410] sm:$0xff]
    %v222 = vld [vmem:[#allocation3 + $0x418] sm:$0xff]
    %v223 = vld [vmem:[#allocation3 + $0x420] sm:$0xff]
    %v224 = vld [vmem:[#allocation3 + $0x428] sm:$0xff]
    %v225 = vld [vmem:[#allocation3 + $0x430] sm:$0xff]
    %v226 = vld [vmem:[#allocation3 + $0x438] sm:$0xff]
    %v227 = vld [vmem:[#allocation3 + $0x440] sm:$0xff]
    %v228 = vld [vmem:[#allocation3 + $0x448] sm:$0xff]
    %v229 = vld [vmem:[#allocation3 + $0x450] sm:$0xff]
    %v230 = vld [vmem:[#allocation3 + $0x458] sm:$0xff]
    %v231 = vld [vmem:[#allocation3 + $0x460] sm:$0xff]
    %v232 = vld [vmem:[#allocation3 + $0x468] sm:$0xff]
    %v233 = vld [vmem:[#allocation3 + $0x470] sm:$0xff]
    %v234 = vld [vmem:[#allocation3 + $0x478] sm:$0xff]
    %v235 = vld [vmem:[#allocation3 + $0x480] sm:$0xff]
    %v236 = vld [vmem:[#allocation3 + $0x488] sm:$0xff]
    %v237 = vld [vmem:[#allocation3 + $0x490] sm:$0xff]
    %v238 = vld [vmem:[#allocation3 + $0x498] sm:$0xff]
    %v239 = vld [vmem:[#allocation3 + $0x4a0] sm:$0xff]
    %v240 = vld [vmem:[#allocation3 + $0x4a8] sm:$0xff]
    %v241 = vld [vmem:[#allocation3 + $0x4b0] sm:$0xff]
    %v242 = vld [vmem:[#allocation3 + $0x4b8] sm:$0xff]
    %v243 = vld [vmem:[#allocation3 + $0x4c0] sm:$0xff]
    %v244 = vld [vmem:[#allocation3 + $0x4c8] sm:$0xff]
    %v245 = vld [vmem:[#allocation3 + $0x4d0] sm:$0xff]
    %v246 = vld [vmem:[#allocation3 + $0x4d8] sm:$0xff]
    %v247 = vld [vmem:[#allocation3 + $0x4e0] sm:$0xff]
    %v248 = vld [vmem:[#allocation3 + $0x4e8] sm:$0xff]
    %v249 = vld [vmem:[#allocation3 + $0x4f0] sm:$0xff]
    %v250 = vld [vmem:[#allocation3 + $0x4f8] sm:$0xff]
    %v251 = vld [vmem:[#allocation3 + $0x500] sm:$0xff]
    %v252 = vld [vmem:[#allocation3 + $0x508] sm:$0xff]
    %v253 = vld [vmem:[#allocation3 + $0x510] sm:$0xff]
    %v254 = vld [vmem:[#allocation3 + $0x518] sm:$0xff]
    %v255 = vld [vmem:[#allocation3 + $0x520] sm:$0xff]
    %v256 = vld [vmem:[#allocation3 + $0x528] sm:$0xff]
    %v257 = vld [vmem:[#allocation3 + $0x530] sm:$0xff]
    %v258 = vld [vmem:[#allocation3 + $0x538] sm:$0xff]
    %v259 = vld [vmem:[#allocation3 + $0x540] sm:$0xff]
    %v260 = vld [vmem:[#allocation3 + $0x548] sm:$0xff]
    %v261 = vld [vmem:[#allocation3 + $0x550] sm:$0xff]
    %v262 = vld [vmem:[#allocation3 + $0x558] sm:$0xff]
    %v263 = vld [vmem:[#allocation3 + $0x560] sm:$0xff]
    %v264 = vld [vmem:[#allocation3 + $0x568] sm:$0xff]
    %v265 = vld [vmem:[#allocation3 + $0x570] sm:$0xff]
    %v266 = vld [vmem:[#allocation3 + $0x578] sm:$0xff]
    %v267 = vld [vmem:[#allocation3 + $0x580] sm:$0xff]
    %v268 = vld [vmem:[#allocation3 + $0x588] sm:$0xff]
    %v269 = vld [vmem:[#allocation3 + $0x590] sm:$0xff]
    %v270 = vld [vmem:[#allocation3 + $0x598] sm:$0xff]
    %v271 = vld [vmem:[#allocation3 + $0x5a0] sm:$0xff]
    %v272 = vld [vmem:[#allocation3 + $0x5a8] sm:$0xff]
    %v273 = vld [vmem:[#allocation3 + $0x5b0] sm:$0xff]
    %v274 = vld [vmem:[#allocation3 + $0x5b8] sm:$0xff]
    %v275 = vld [vmem:[#allocation3 + $0x5c0] sm:$0xff]
    %v276 = vld [vmem:[#allocation3 + $0x5c8] sm:$0xff]
    %v277 = vld [vmem:[#allocation3 + $0x5d0] sm:$0xff]
    %v278 = vld [vmem:[#allocation3 + $0x5d8] sm:$0xff]
    %v279 = vld [vmem:[#allocation3 + $0x5e0] sm:$0xff]
    %v280 = vld [vmem:[#allocation3 + $0x5e8] sm:$0xff]
    %v281 = vld [vmem:[#allocation3 + $0x5f0] sm:$0xff]
    %v282 = vld [vmem:[#allocation3 + $0x5f8] sm:$0xff]
    %v283 = vld [vmem:[#allocation3 + $0x600] sm:$0xff]
    %v284 = vld [vmem:[#allocation3 + $0x608] sm:$0xff]
    %v285 = vld [vmem:[#allocation3 + $0x610] sm:$0xff]
    %v286 = vld [vmem:[#allocation3 + $0x618] sm:$0xff]
    %v287 = vld [vmem:[%s2] sm:$0xf]
    %v289 = vperm.slane %v287, 0
    %v290 = vperm.slane %v287, 1
    %v291 = vperm.slane %v287, 2
    %v292 = vperm.slane %v287, 3
    %v493 = vunpack.c.l.b16 %v91
    %v494 = vunpack.c.h.b16 %v91
    %v495 = vunpack.c.l.b16 %v92
    %v496 = vunpack.c.h.b16 %v92
    %v497 = vunpack.c.l.b16 %v93
    %v498 = vunpack.c.h.b16 %v93
    %v499 = vunpack.c.l.b16 %v94
    %v500 = vunpack.c.h.b16 %v94
    %v501 = vunpack.c.l.b16 %v95
    %v502 = vunpack.c.h.b16 %v95
    %v503 = vunpack.c.l.b16 %v96
    %v504 = vunpack.c.h.b16 %v96
    %v505 = vunpack.c.l.b16 %v97
    %v506 = vunpack.c.h.b16 %v97
    %v507 = vunpack.c.l.b16 %v98
    %v508 = vunpack.c.h.b16 %v98
    %v509 = vunpack.c.l.b16 %v99
    %v510 = vunpack.c.h.b16 %v99
    %v511 = vunpack.c.l.b16 %v100
    %v512 = vunpack.c.h.b16 %v100
    %v513 = vunpack.c.l.b16 %v101
    %v514 = vunpack.c.h.b16 %v101
    %v515 = vunpack.c.l.b16 %v102
    %v516 = vunpack.c.h.b16 %v102
    %v517 = vunpack.c.l.b16 %v103
    %v518 = vunpack.c.h.b16 %v103
    %v519 = vunpack.c.l.b16 %v104
    %v520 = vunpack.c.h.b16 %v104
    %v521 = vunpack.c.l.b16 %v105
    %v522 = vunpack.c.h.b16 %v105
    %v523 = vunpack.c.l.b16 %v106
    %v524 = vunpack.c.h.b16 %v106
    %v525 = vunpack.c.l.b16 %v107
    %v526 = vunpack.c.h.b16 %v107
    %v527 = vunpack.c.l.b16 %v108
    %v528 = vunpack.c.h.b16 %v108
    %v529 = vunpack.c.l.b16 %v109
    %v530 = vunpack.c.h.b16 %v109
    %v531 = vunpack.c.l.b16 %v110
    %v532 = vunpack.c.h.b16 %v110
    %v533 = vunpack.c.l.b16 %v111
    %v534 = vunpack.c.h.b16 %v111
    %v535 = vunpack.c.l.b16 %v112
    %v536 = vunpack.c.h.b16 %v112
    %v537 = vunpack.c.l.b16 %v113
    %v538 = vunpack.c.h.b16 %v113
    %v539 = vunpack.c.l.b16 %v114
    %v540 = vunpack.c.h.b16 %v114
    %v541 = vunpack.c.l.b16 %v115
    %v542 = vunpack.c.h.b16 %v115
    %v543 = vunpack.c.l.b16 %v116
    %v544 = vunpack.c.h.b16 %v116
    %v545 = vunpack.c.l.b16 %v117
    %v546 = vunpack.c.h.b16 %v117
    %v547 = vunpack.c.l.b16 %v118
    %v548 = vunpack.c.h.b16 %v118
    %v549 = vunpack.c.l.b16 %v119
    %v550 = vunpack.c.h.b16 %v119
    %v551 = vunpack.c.l.b16 %v120
    %v552 = vunpack.c.h.b16 %v120
    %v553 = vunpack.c.l.b16 %v121
    %v554 = vunpack.c.h.b16 %v121
    %v555 = vunpack.c.l.b16 %v122
    %v556 = vunpack.c.h.b16 %v122
    %v557 = vunpack.c.l.b16 %v123
    %v558 = vunpack.c.h.b16 %v123
    %v559 = vunpack.c.l.b16 %v124
    %v560 = vunpack.c.h.b16 %v124
    %v561 = vunpack.c.l.b16 %v125
    %v562 = vunpack.c.h.b16 %v125
    %v563 = vunpack.c.l.b16 %v126
    %v564 = vunpack.c.h.b16 %v126
    %v565 = vunpack.c.l.b16 %v127
    %v566 = vunpack.c.h.b16 %v127
    %v567 = vunpack.c.l.b16 %v128
    %v568 = vunpack.c.h.b16 %v128
    %v569 = vunpack.c.l.b16 %v129
    %v570 = vunpack.c.h.b16 %v129
    %v571 = vunpack.c.l.b16 %v130
    %v572 = vunpack.c.h.b16 %v130
    %v573 = vunpack.c.l.b16 %v131
    %v574 = vunpack.c.h.b16 %v131
    %v575 = vunpack.c.l.b16 %v132
    %v576 = vunpack.c.h.b16 %v132
    %v577 = vunpack.c.l.b16 %v133
    %v578 = vunpack.c.h.b16 %v133
    %v579 = vunpack.c.l.b16 %v134
    %v580 = vunpack.c.h.b16 %v134
    %v581 = vunpack.c.l.b16 %v135
    %v582 = vunpack.c.h.b16 %v135
    %v583 = vunpack.c.l.b16 %v136
    %v584 = vunpack.c.h.b16 %v136
    %v585 = vunpack.c.l.b16 %v137
    %v586 = vunpack.c.h.b16 %v137
    %v587 = vunpack.c.l.b16 %v138
    %v588 = vunpack.c.h.b16 %v138
    %v589 = vunpack.c.l.b16 %v139
    %v590 = vunpack.c.h.b16 %v139
    %v591 = vunpack.c.l.b16 %v140
    %v592 = vunpack.c.h.b16 %v140
    %v593 = vunpack.c.l.b16 %v141
    %v594 = vunpack.c.h.b16 %v141
    %v595 = vunpack.c.l.b16 %v142
    %v596 = vunpack.c.h.b16 %v142
    %v597 = vunpack.c.l.b16 %v143
    %v598 = vunpack.c.h.b16 %v143
    %v599 = vunpack.c.l.b16 %v144
    %v600 = vunpack.c.h.b16 %v144
    %v601 = vunpack.c.l.b16 %v145
    %v602 = vunpack.c.h.b16 %v145
    %v603 = vunpack.c.l.b16 %v146
    %v604 = vunpack.c.h.b16 %v146
    %v605 = vunpack.c.l.b16 %v147
    %v606 = vunpack.c.h.b16 %v147
    %v607 = vunpack.c.l.b16 %v148
    %v608 = vunpack.c.h.b16 %v148
    %v609 = vunpack.c.l.b16 %v149
    %v610 = vunpack.c.h.b16 %v149
    %v611 = vunpack.c.l.b16 %v150
    %v612 = vunpack.c.h.b16 %v150
    %v613 = vunpack.c.l.b16 %v151
    %v614 = vunpack.c.h.b16 %v151
    %v615 = vunpack.c.l.b16 %v152
    %v616 = vunpack.c.h.b16 %v152
    %v617 = vunpack.c.l.b16 %v153
    %v618 = vunpack.c.h.b16 %v153
    %v619 = vunpack.c.l.b16 %v154
    %v620 = vunpack.c.h.b16 %v154
    %v621 = vunpack.c.l.b16 %v155
    %v622 = vunpack.c.h.b16 %v155
    %v623 = vunpack.c.l.b16 %v156
    %v624 = vunpack.c.h.b16 %v156
    %v625 = vunpack.c.l.b16 %v157
    %v626 = vunpack.c.h.b16 %v157
    %v627 = vunpack.c.l.b16 %v158
    %v628 = vunpack.c.h.b16 %v158
    %v629 = vunpack.c.l.b16 %v159
    %v630 = vunpack.c.h.b16 %v159
    %v631 = vunpack.c.l.b16 %v160
    %v632 = vunpack.c.h.b16 %v160
    %v633 = vunpack.c.l.b16 %v161
    %v634 = vunpack.c.h.b16 %v161
    %v635 = vunpack.c.l.b16 %v162
    %v636 = vunpack.c.h.b16 %v162
    %v637 = vunpack.c.l.b16 %v163
    %v638 = vunpack.c.h.b16 %v163
    %v639 = vunpack.c.l.b16 %v164
    %v640 = vunpack.c.h.b16 %v164
    %v641 = vunpack.c.l.b16 %v165
    %v642 = vunpack.c.h.b16 %v165
    %v643 = vunpack.c.l.b16 %v166
    %v644 = vunpack.c.h.b16 %v166
    %v645 = vunpack.c.l.b16 %v167
    %v646 = vunpack.c.h.b16 %v167
    %v647 = vunpack.c.l.b16 %v168
    %v648 = vunpack.c.h.b16 %v168
    %v649 = vunpack.c.l.b16 %v169
    %v650 = vunpack.c.h.b16 %v169
    %v651 = vunpack.c.l.b16 %v170
    %v652 = vunpack.c.h.b16 %v170
    %v653 = vunpack.c.l.b16 %v171
    %v654 = vunpack.c.h.b16 %v171
    %v655 = vunpack.c.l.b16 %v172
    %v656 = vunpack.c.h.b16 %v172
    %v657 = vunpack.c.l.b16 %v173
    %v658 = vunpack.c.h.b16 %v173
    %v659 = vunpack.c.l.b16 %v174
    %v660 = vunpack.c.h.b16 %v174
    %v661 = vunpack.c.l.b16 %v175
    %v662 = vunpack.c.h.b16 %v175
    %v663 = vunpack.c.l.b16 %v176
    %v664 = vunpack.c.h.b16 %v176
    %v665 = vunpack.c.l.b16 %v177
    %v666 = vunpack.c.h.b16 %v177
    %v667 = vunpack.c.l.b16 %v178
    %v668 = vunpack.c.h.b16 %v178
    %v669 = vunpack.c.l.b16 %v179
    %v670 = vunpack.c.h.b16 %v179
    %v671 = vunpack.c.l.b16 %v180
    %v672 = vunpack.c.h.b16 %v180
    %v673 = vunpack.c.l.b16 %v181
    %v674 = vunpack.c.h.b16 %v181
    %v675 = vunpack.c.l.b16 %v182
    %v676 = vunpack.c.h.b16 %v182
    %v677 = vunpack.c.l.b16 %v183
    %v678 = vunpack.c.h.b16 %v183
    %v679 = vunpack.c.l.b16 %v184
    %v680 = vunpack.c.h.b16 %v184
    %v681 = vunpack.c.l.b16 %v185
    %v682 = vunpack.c.h.b16 %v185
    %v683 = vunpack.c.l.b16 %v186
    %v684 = vunpack.c.h.b16 %v186
    %v685 = vunpack.c.l.b16 %v187
    %v686 = vunpack.c.h.b16 %v187
    %v687 = vunpack.c.l.b16 %v188
    %v688 = vunpack.c.h.b16 %v188
    %v689 = vunpack.c.l.b16 %v189
    %v690 = vunpack.c.h.b16 %v189
    %v691 = vunpack.c.l.b16 %v190
    %v692 = vunpack.c.h.b16 %v190
    %v693 = vunpack.c.l.b16 %v191
    %v694 = vunpack.c.h.b16 %v191
    %v695 = vunpack.c.l.b16 %v192
    %v696 = vunpack.c.h.b16 %v192
    %v697 = vunpack.c.l.b16 %v193
    %v698 = vunpack.c.h.b16 %v193
    %v699 = vunpack.c.l.b16 %v194
    %v700 = vunpack.c.h.b16 %v194
    %v701 = vunpack.c.l.b16 %v195
    %v702 = vunpack.c.h.b16 %v195
    %v703 = vunpack.c.l.b16 %v196
    %v704 = vunpack.c.h.b16 %v196
    %v705 = vunpack.c.l.b16 %v197
    %v706 = vunpack.c.h.b16 %v197
    %v707 = vunpack.c.l.b16 %v198
    %v708 = vunpack.c.h.b16 %v198
    %v709 = vunpack.c.l.b16 %v199
    %v710 = vunpack.c.h.b16 %v199
    %v711 = vunpack.c.l.b16 %v200
    %v712 = vunpack.c.h.b16 %v200
    %v713 = vunpack.c.l.b16 %v201
    %v714 = vunpack.c.h.b16 %v201
    %v715 = vunpack.c.l.b16 %v202
    %v716 = vunpack.c.h.b16 %v202
    %v717 = vunpack.c.l.b16 %v203
    %v718 = vunpack.c.h.b16 %v203
    %v719 = vunpack.c.l.b16 %v204
    %v720 = vunpack.c.h.b16 %v204
    %v721 = vunpack.c.l.b16 %v205
    %v722 = vunpack.c.h.b16 %v205
    %v723 = vunpack.c.l.b16 %v206
    %v724 = vunpack.c.h.b16 %v206
    %v725 = vunpack.c.l.b16 %v207
    %v726 = vunpack.c.h.b16 %v207
    %v727 = vunpack.c.l.b16 %v208
    %v728 = vunpack.c.h.b16 %v208
    %v729 = vunpack.c.l.b16 %v209
    %v730 = vunpack.c.h.b16 %v209
    %v731 = vunpack.c.l.b16 %v210
    %v732 = vunpack.c.h.b16 %v210
    %v733 = vunpack.c.l.b16 %v211
    %v734 = vunpack.c.h.b16 %v211
    %v735 = vunpack.c.l.b16 %v212
    %v736 = vunpack.c.h.b16 %v212
    %v737 = vunpack.c.l.b16 %v213
    %v738 = vunpack.c.h.b16 %v213
    %v739 = vunpack.c.l.b16 %v214
    %v740 = vunpack.c.h.b16 %v214
    %v741 = vunpack.c.l.b16 %v215
    %v742 = vunpack.c.h.b16 %v215
    %v743 = vunpack.c.l.b16 %v216
    %v744 = vunpack.c.h.b16 %v216
    %v745 = vunpack.c.l.b16 %v217
    %v746 = vunpack.c.h.b16 %v217
    %v747 = vunpack.c.l.b16 %v218
    %v748 = vunpack.c.h.b16 %v218
    %v749 = vunpack.c.l.b16 %v219
    %v750 = vunpack.c.h.b16 %v219
    %v751 = vunpack.c.l.b16 %v220
    %v752 = vunpack.c.h.b16 %v220
    %v753 = vunpack.c.l.b16 %v221
    %v754 = vunpack.c.h.b16 %v221
    %v755 = vunpack.c.l.b16 %v222
    %v756 = vunpack.c.h.b16 %v222
    %v757 = vunpack.c.l.b16 %v223
    %v758 = vunpack.c.h.b16 %v223
    %v759 = vunpack.c.l.b16 %v224
    %v760 = vunpack.c.h.b16 %v224
    %v761 = vunpack.c.l.b16 %v225
    %v762 = vunpack.c.h.b16 %v225
    %v763 = vunpack.c.l.b16 %v226
    %v764 = vunpack.c.h.b16 %v226
    %v765 = vunpack.c.l.b16 %v227
    %v766 = vunpack.c.h.b16 %v227
    %v767 = vunpack.c.l.b16 %v228
    %v768 = vunpack.c.h.b16 %v228
    %v769 = vunpack.c.l.b16 %v229
    %v770 = vunpack.c.h.b16 %v229
    %v771 = vunpack.c.l.b16 %v230
    %v772 = vunpack.c.h.b16 %v230
    %v773 = vunpack.c.l.b16 %v231
    %v774 = vunpack.c.h.b16 %v231
    %v775 = vunpack.c.l.b16 %v232
    %v776 = vunpack.c.h.b16 %v232
    %v777 = vunpack.c.l.b16 %v233
    %v778 = vunpack.c.h.b16 %v233
    %v779 = vunpack.c.l.b16 %v234
    %v780 = vunpack.c.h.b16 %v234
    %v781 = vunpack.c.l.b16 %v235
    %v782 = vunpack.c.h.b16 %v235
    %v783 = vunpack.c.l.b16 %v236
    %v784 = vunpack.c.h.b16 %v236
    %v785 = vunpack.c.l.b16 %v237
    %v786 = vunpack.c.h.b16 %v237
    %v787 = vunpack.c.l.b16 %v238
    %v788 = vunpack.c.h.b16 %v238
    %v789 = vunpack.c.l.b16 %v239
    %v790 = vunpack.c.h.b16 %v239
    %v791 = vunpack.c.l.b16 %v240
    %v792 = vunpack.c.h.b16 %v240
    %v793 = vunpack.c.l.b16 %v241
    %v794 = vunpack.c.h.b16 %v241
    %v795 = vunpack.c.l.b16 %v242
    %v796 = vunpack.c.h.b16 %v242
    %v797 = vunpack.c.l.b16 %v243
    %v798 = vunpack.c.h.b16 %v243
    %v799 = vunpack.c.l.b16 %v244
    %v800 = vunpack.c.h.b16 %v244
    %v801 = vunpack.c.l.b16 %v245
    %v802 = vunpack.c.h.b16 %v245
    %v803 = vunpack.c.l.b16 %v246
    %v804 = vunpack.c.h.b16 %v246
    %v805 = vunpack.c.l.b16 %v247
    %v806 = vunpack.c.h.b16 %v247
    %v807 = vunpack.c.l.b16 %v248
    %v808 = vunpack.c.h.b16 %v248
    %v809 = vunpack.c.l.b16 %v249
    %v810 = vunpack.c.h.b16 %v249
    %v811 = vunpack.c.l.b16 %v250
    %v812 = vunpack.c.h.b16 %v250
    %v813 = vunpack.c.l.b16 %v251
    %v814 = vunpack.c.h.b16 %v251
    %v815 = vunpack.c.l.b16 %v252
    %v816 = vunpack.c.h.b16 %v252
    %v817 = vunpack.c.l.b16 %v253
    %v818 = vunpack.c.h.b16 %v253
    %v819 = vunpack.c.l.b16 %v254
    %v820 = vunpack.c.h.b16 %v254
    %v821 = vunpack.c.l.b16 %v255
    %v822 = vunpack.c.h.b16 %v255
    %v823 = vunpack.c.l.b16 %v256
    %v824 = vunpack.c.h.b16 %v256
    %v825 = vunpack.c.l.b16 %v257
    %v826 = vunpack.c.h.b16 %v257
    %v827 = vunpack.c.l.b16 %v258
    %v828 = vunpack.c.h.b16 %v258
    %v829 = vunpack.c.l.b16 %v259
    %v830 = vunpack.c.h.b16 %v259
    %v831 = vunpack.c.l.b16 %v260
    %v832 = vunpack.c.h.b16 %v260
    %v833 = vunpack.c.l.b16 %v261
    %v834 = vunpack.c.h.b16 %v261
    %v835 = vunpack.c.l.b16 %v262
    %v836 = vunpack.c.h.b16 %v262
    %v837 = vunpack.c.l.b16 %v263
    %v838 = vunpack.c.h.b16 %v263
    %v839 = vunpack.c.l.b16 %v264
    %v840 = vunpack.c.h.b16 %v264
    %v841 = vunpack.c.l.b16 %v265
    %v842 = vunpack.c.h.b16 %v265
    %v843 = vunpack.c.l.b16 %v266
    %v844 = vunpack.c.h.b16 %v266
    %v845 = vunpack.c.l.b16 %v267
    %v846 = vunpack.c.h.b16 %v267
    %v847 = vunpack.c.l.b16 %v268
    %v848 = vunpack.c.h.b16 %v268
    %v849 = vunpack.c.l.b16 %v269
    %v850 = vunpack.c.h.b16 %v269
    %v851 = vunpack.c.l.b16 %v270
    %v852 = vunpack.c.h.b16 %v270
    %v853 = vunpack.c.l.b16 %v271
    %v854 = vunpack.c.h.b16 %v271
    %v855 = vunpack.c.l.b16 %v272
    %v856 = vunpack.c.h.b16 %v272
    %v857 = vunpack.c.l.b16 %v273
    %v858 = vunpack.c.h.b16 %v273
    %v859 = vunpack.c.l.b16 %v274
    %v860 = vunpack.c.h.b16 %v274
    %v861 = vunpack.c.l.b16 %v275
    %v862 = vunpack.c.h.b16 %v275
    %v863 = vunpack.c.l.b16 %v276
    %v864 = vunpack.c.h.b16 %v276
    %v865 = vunpack.c.l.b16 %v277
    %v866 = vunpack.c.h.b16 %v277
    %v867 = vunpack.c.l.b16 %v278
    %v868 = vunpack.c.h.b16 %v278
    %v869 = vunpack.c.l.b16 %v279
    %v870 = vunpack.c.h.b16 %v279
    %v871 = vunpack.c.l.b16 %v280
    %v872 = vunpack.c.h.b16 %v280
    %v873 = vunpack.c.l.b16 %v281
    %v874 = vunpack.c.h.b16 %v281
    %v875 = vunpack.c.l.b16 %v282
    %v876 = vunpack.c.h.b16 %v282
    %v877 = vunpack.c.l.b16 %v283
    %v878 = vunpack.c.h.b16 %v283
    %v879 = vunpack.c.l.b16 %v284
    %v880 = vunpack.c.h.b16 %v284
    %v881 = vunpack.c.l.b16 %v285
    %v882 = vunpack.c.h.b16 %v285
    %v883 = vunpack.c.l.b16 %v286
    %v884 = vunpack.c.h.b16 %v286
    %v885 = vpack.c.b16 %v497, %v493
    %v886 = vpack.c.b16 %v498, %v494
    %v887 = vpack.c.b16 %v499, %v495
    %v888 = vpack.c.b16 %v500, %v496
    %v889 = vpack.c.b16 %v505, %v501
    %v890 = vpack.c.b16 %v506, %v502
    %v891 = vpack.c.b16 %v507, %v503
    %v892 = vpack.c.b16 %v508, %v504
    %v893 = vpack.c.b16 %v513, %v509
    %v894 = vpack.c.b16 %v514, %v510
    %v895 = vpack.c.b16 %v515, %v511
    %v896 = vpack.c.b16 %v516, %v512
    %v897 = vpack.c.b16 %v521, %v517
    %v898 = vpack.c.b16 %v522, %v518
    %v899 = vpack.c.b16 %v523, %v519
    %v900 = vpack.c.b16 %v524, %v520
    %v901 = vpack.c.b16 %v529, %v525
    %v902 = vpack.c.b16 %v530, %v526
    %v903 = vpack.c.b16 %v531, %v527
    %v904 = vpack.c.b16 %v532, %v528
    %v905 = vpack.c.b16 %v537, %v533
    %v906 = vpack.c.b16 %v538, %v534
    %v907 = vpack.c.b16 %v539, %v535
    %v908 = vpack.c.b16 %v540, %v536
    %v909 = vpack.c.b16 %v545, %v541
    %v910 = vpack.c.b16 %v546, %v542
    %v911 = vpack.c.b16 %v547, %v543
    %v912 = vpack.c.b16 %v548, %v544
    %v913 = vpack.c.b16 %v553, %v549
    %v914 = vpack.c.b16 %v554, %v550
    %v915 = vpack.c.b16 %v555, %v551
    %v916 = vpack.c.b16 %v556, %v552
    %v917 = vpack.c.b16 %v561, %v557
    %v918 = vpack.c.b16 %v562, %v558
    %v919 = vpack.c.b16 %v563, %v559
    %v920 = vpack.c.b16 %v564, %v560
    %v921 = vpack.c.b16 %v569, %v565
    %v922 = vpack.c.b16 %v570, %v566
    %v923 = vpack.c.b16 %v571, %v567
    %v924 = vpack.c.b16 %v572, %v568
    %v925 = vpack.c.b16 %v577, %v573
    %v926 = vpack.c.b16 %v578, %v574
    %v927 = vpack.c.b16 %v579, %v575
    %v928 = vpack.c.b16 %v580, %v576
    %v929 = vpack.c.b16 %v585, %v581
    %v930 = vpack.c.b16 %v586, %v582
    %v931 = vpack.c.b16 %v587, %v583
    %v932 = vpack.c.b16 %v588, %v584
    %v933 = vpack.c.b16 %v593, %v589
    %v934 = vpack.c.b16 %v594, %v590
    %v935 = vpack.c.b16 %v595, %v591
    %v936 = vpack.c.b16 %v596, %v592
    %v937 = vpack.c.b16 %v601, %v597
    %v938 = vpack.c.b16 %v602, %v598
    %v939 = vpack.c.b16 %v603, %v599
    %v940 = vpack.c.b16 %v604, %v600
    %v941 = vpack.c.b16 %v609, %v605
    %v942 = vpack.c.b16 %v610, %v606
    %v943 = vpack.c.b16 %v611, %v607
    %v944 = vpack.c.b16 %v612, %v608
    %v945 = vpack.c.b16 %v617, %v613
    %v946 = vpack.c.b16 %v618, %v614
    %v947 = vpack.c.b16 %v619, %v615
    %v948 = vpack.c.b16 %v620, %v616
    %v949 = vpack.c.b16 %v625, %v621
    %v950 = vpack.c.b16 %v626, %v622
    %v951 = vpack.c.b16 %v627, %v623
    %v952 = vpack.c.b16 %v628, %v624
    %v953 = vpack.c.b16 %v633, %v629
    %v954 = vpack.c.b16 %v634, %v630
    %v955 = vpack.c.b16 %v635, %v631
    %v956 = vpack.c.b16 %v636, %v632
    %v957 = vpack.c.b16 %v641, %v637
    %v958 = vpack.c.b16 %v642, %v638
    %v959 = vpack.c.b16 %v643, %v639
    %v960 = vpack.c.b16 %v644, %v640
    %v961 = vpack.c.b16 %v649, %v645
    %v962 = vpack.c.b16 %v650, %v646
    %v963 = vpack.c.b16 %v651, %v647
    %v964 = vpack.c.b16 %v652, %v648
    %v965 = vpack.c.b16 %v657, %v653
    %v966 = vpack.c.b16 %v658, %v654
    %v967 = vpack.c.b16 %v659, %v655
    %v968 = vpack.c.b16 %v660, %v656
    %v969 = vpack.c.b16 %v665, %v661
    %v970 = vpack.c.b16 %v666, %v662
    %v971 = vpack.c.b16 %v667, %v663
    %v972 = vpack.c.b16 %v668, %v664
    %v973 = vpack.c.b16 %v673, %v669
    %v974 = vpack.c.b16 %v674, %v670
    %v975 = vpack.c.b16 %v675, %v671
    %v976 = vpack.c.b16 %v676, %v672
    %v977 = vpack.c.b16 %v681, %v677
    %v978 = vpack.c.b16 %v682, %v678
    %v979 = vpack.c.b16 %v683, %v679
    %v980 = vpack.c.b16 %v684, %v680
    %v981 = vpack.c.b16 %v689, %v685
    %v982 = vpack.c.b16 %v690, %v686
    %v983 = vpack.c.b16 %v691, %v687
    %v984 = vpack.c.b16 %v692, %v688
    %v985 = vpack.c.b16 %v697, %v693
    %v986 = vpack.c.b16 %v698, %v694
    %v987 = vpack.c.b16 %v699, %v695
    %v988 = vpack.c.b16 %v700, %v696
    %v989 = vpack.c.b16 %v705, %v701
    %v990 = vpack.c.b16 %v706, %v702
    %v991 = vpack.c.b16 %v707, %v703
    %v992 = vpack.c.b16 %v708, %v704
    %v993 = vpack.c.b16 %v713, %v709
    %v994 = vpack.c.b16 %v714, %v710
    %v995 = vpack.c.b16 %v715, %v711
    %v996 = vpack.c.b16 %v716, %v712
    %v997 = vpack.c.b16 %v721, %v717
    %v998 = vpack.c.b16 %v722, %v718
    %v999 = vpack.c.b16 %v723, %v719
    %v1000 = vpack.c.b16 %v724, %v720
    %v1001 = vpack.c.b16 %v729, %v725
    %v1002 = vpack.c.b16 %v730, %v726
    %v1003 = vpack.c.b16 %v731, %v727
    %v1004 = vpack.c.b16 %v732, %v728
    %v1005 = vpack.c.b16 %v737, %v733
    %v1006 = vpack.c.b16 %v738, %v734
    %v1007 = vpack.c.b16 %v739, %v735
    %v1008 = vpack.c.b16 %v740, %v736
    %v1009 = vpack.c.b16 %v745, %v741
    %v1010 = vpack.c.b16 %v746, %v742
    %v1011 = vpack.c.b16 %v747, %v743
    %v1012 = vpack.c.b16 %v748, %v744
    %v1013 = vpack.c.b16 %v753, %v749
    %v1014 = vpack.c.b16 %v754, %v750
    %v1015 = vpack.c.b16 %v755, %v751
    %v1016 = vpack.c.b16 %v756, %v752
    %v1017 = vpack.c.b16 %v761, %v757
    %v1018 = vpack.c.b16 %v762, %v758
    %v1019 = vpack.c.b16 %v763, %v759
    %v1020 = vpack.c.b16 %v764, %v760
    %v1021 = vpack.c.b16 %v769, %v765
    %v1022 = vpack.c.b16 %v770, %v766
    %v1023 = vpack.c.b16 %v771, %v767
    %v1024 = vpack.c.b16 %v772, %v768
    %v1025 = vpack.c.b16 %v777, %v773
    %v1026 = vpack.c.b16 %v778, %v774
    %v1027 = vpack.c.b16 %v779, %v775
    %v1028 = vpack.c.b16 %v780, %v776
    %v1029 = vpack.c.b16 %v785, %v781
    %v1030 = vpack.c.b16 %v786, %v782
    %v1031 = vpack.c.b16 %v787, %v783
    %v1032 = vpack.c.b16 %v788, %v784
    %v1033 = vpack.c.b16 %v793, %v789
    %v1034 = vpack.c.b16 %v794, %v790
    %v1035 = vpack.c.b16 %v795, %v791
    %v1036 = vpack.c.b16 %v796, %v792
    %v1037 = vpack.c.b16 %v801, %v797
    %v1038 = vpack.c.b16 %v802, %v798
    %v1039 = vpack.c.b16 %v803, %v799
    %v1040 = vpack.c.b16 %v804, %v800
    %v1041 = vpack.c.b16 %v809, %v805
    %v1042 = vpack.c.b16 %v810, %v806
    %v1043 = vpack.c.b16 %v811, %v807
    %v1044 = vpack.c.b16 %v812, %v808
    %v1045 = vpack.c.b16 %v817, %v813
    %v1046 = vpack.c.b16 %v818, %v814
    %v1047 = vpack.c.b16 %v819, %v815
    %v1048 = vpack.c.b16 %v820, %v816
    %v1049 = vpack.c.b16 %v825, %v821
    %v1050 = vpack.c.b16 %v826, %v822
    %v1051 = vpack.c.b16 %v827, %v823
    %v1052 = vpack.c.b16 %v828, %v824
    %v1053 = vpack.c.b16 %v833, %v829
    %v1054 = vpack.c.b16 %v834, %v830
    %v1055 = vpack.c.b16 %v835, %v831
    %v1056 = vpack.c.b16 %v836, %v832
    %v1057 = vpack.c.b16 %v841, %v837
    %v1058 = vpack.c.b16 %v842, %v838
    %v1059 = vpack.c.b16 %v843, %v839
    %v1060 = vpack.c.b16 %v844, %v840
    %v1061 = vpack.c.b16 %v849, %v845
    %v1062 = vpack.c.b16 %v850, %v846
    %v1063 = vpack.c.b16 %v851, %v847
    %v1064 = vpack.c.b16 %v852, %v848
    %v1065 = vpack.c.b16 %v857, %v853
    %v1066 = vpack.c.b16 %v858, %v854
    %v1067 = vpack.c.b16 %v859, %v855
    %v1068 = vpack.c.b16 %v860, %v856
    %v1069 = vpack.c.b16 %v865, %v861
    %v1070 = vpack.c.b16 %v866, %v862
    %v1071 = vpack.c.b16 %v867, %v863
    %v1072 = vpack.c.b16 %v868, %v864
    %v1073 = vpack.c.b16 %v873, %v869
    %v1074 = vpack.c.b16 %v874, %v870
    %v1075 = vpack.c.b16 %v875, %v871
    %v1076 = vpack.c.b16 %v876, %v872
    %v1077 = vpack.c.b16 %v881, %v877
    %v1078 = vpack.c.b16 %v882, %v878
    %v1079 = vpack.c.b16 %v883, %v879
    %v1080 = vpack.c.b16 %v884, %v880
    %vm1277 = vcmask 130048
    %v1279 = vsel %vm1277, %v90, 0
    %1281 = vmatpush.bf16.msra.mxu0 %v913
    %1282 = vmatpush.bf16.msra.mxu0 %v909
    %1283 = vmatpush.bf16.msra.mxu0 %v905
    %1284 = vmatpush.bf16.msra.mxu0 %v901
    %1285 = vmatpush.bf16.msra.mxu0 %v897
    %1286 = vmatpush.bf16.msra.mxu0 %v893
    %1287 = vmatpush.bf16.msra.mxu0 %v889
    %1288 = vmatpush.bf16.msra.mxu0 %v885
    %1289 = vmatmul.bf16.gmra.mxu0 %v84
    %v1290 = vpop.f32.mrf.mxu0
    %v1291 = vadd.f32 %v289, %v1290
    %v1292 = vpop.f32.mrf.mxu0
    %1293 = vdwg.mxu0
    %1294 = vmatpush.bf16.msra.mxu0 %v945
    %1295 = vmatpush.bf16.msra.mxu0 %v941
    %1296 = vmatpush.bf16.msra.mxu0 %v937
    %1297 = vmatpush.bf16.msra.mxu0 %v933
    %1298 = vmatpush.bf16.msra.mxu0 %v929
    %1299 = vmatpush.bf16.msra.mxu0 %v925
    %1300 = vmatpush.bf16.msra.mxu0 %v921
    %1301 = vmatpush.bf16.msra.mxu0 %v917
    %1302 = vmatmul.bf16.gmra.mxu0 %v85
    %v1303 = vpop.f32.mrf.mxu0
    %v1304 = vadd.f32 %v1291, %v1303
    %v1305 = vpop.f32.mrf.mxu0
    %1306 = vdwg.mxu0
    %1307 = vmatpush.bf16.msra.mxu0 %v977
    %1308 = vmatpush.bf16.msra.mxu0 %v973
    %1309 = vmatpush.bf16.msra.mxu0 %v969
    %1310 = vmatpush.bf16.msra.mxu0 %v965
    %1311 = vmatpush.bf16.msra.mxu0 %v961
    %1312 = vmatpush.bf16.msra.mxu0 %v957
    %1313 = vmatpush.bf16.msra.mxu0 %v953
    %1314 = vmatpush.bf16.msra.mxu0 %v949
    %1315 = vmatmul.bf16.gmra.mxu0 %v86
    %v1316 = vpop.f32.mrf.mxu0
    %v1317 = vadd.f32 %v1304, %v1316
    %v1318 = vpop.f32.mrf.mxu0
    %1319 = vdwg.mxu0
    %1320 = vmatpush.bf16.msra.mxu0 %v1009
    %1321 = vmatpush.bf16.msra.mxu0 %v1005
    %1322 = vmatpush.bf16.msra.mxu0 %v1001
    %1323 = vmatpush.bf16.msra.mxu0 %v997
    %1324 = vmatpush.bf16.msra.mxu0 %v993
    %1325 = vmatpush.bf16.msra.mxu0 %v989
    %1326 = vmatpush.bf16.msra.mxu0 %v985
    %1327 = vmatpush.bf16.msra.mxu0 %v981
    %1328 = vmatmul.bf16.gmra.mxu0 %v87
    %v1329 = vpop.f32.mrf.mxu0
    %v1330 = vadd.f32 %v1317, %v1329
    %v1331 = vpop.f32.mrf.mxu0
    %1332 = vdwg.mxu0
    %1333 = vmatpush.bf16.msra.mxu0 %v1041
    %1334 = vmatpush.bf16.msra.mxu0 %v1037
    %1335 = vmatpush.bf16.msra.mxu0 %v1033
    %1336 = vmatpush.bf16.msra.mxu0 %v1029
    %1337 = vmatpush.bf16.msra.mxu0 %v1025
    %1338 = vmatpush.bf16.msra.mxu0 %v1021
    %1339 = vmatpush.bf16.msra.mxu0 %v1017
    %1340 = vmatpush.bf16.msra.mxu0 %v1013
    %1341 = vmatmul.bf16.gmra.mxu0 %v88
    %v1342 = vpop.f32.mrf.mxu0
    %v1343 = vadd.f32 %v1330, %v1342
    %v1344 = vpop.f32.mrf.mxu0
    %1345 = vdwg.mxu0
    %1346 = vmatpush.bf16.msra.mxu0 %v1073
    %1347 = vmatpush.bf16.msra.mxu0 %v1069
    %1348 = vmatpush.bf16.msra.mxu0 %v1065
    %1349 = vmatpush.bf16.msra.mxu0 %v1061
    %1350 = vmatpush.bf16.msra.mxu0 %v1057
    %1351 = vmatpush.bf16.msra.mxu0 %v1053
    %1352 = vmatpush.bf16.msra.mxu0 %v1049
    %1353 = vmatpush.bf16.msra.mxu0 %v1045
    %1354 = vmatmul.bf16.gmra.mxu0 %v89
    %v1355 = vpop.f32.mrf.mxu0
    %v1356 = vadd.f32 %v1343, %v1355
    %v1357 = vpop.f32.mrf.mxu0
    %1358 = vdwg.mxu0
    %1359 = vmatpush.bf16.msra.mxu0 0
    %1360 = vmatpush.bf16.msra.mxu0 0
    %1361 = vmatpush.bf16.msra.mxu0 0
    %1362 = vmatpush.bf16.msra.mxu0 0
    %1363 = vmatpush.bf16.msra.mxu0 0
    %1364 = vmatpush.bf16.msra.mxu0 0
    %1365 = vmatpush.bf16.msra.mxu0 0
    %1366 = vmatpush.bf16.msra.mxu0 %v1077
    %1367 = vmatmul.bf16.gmra.mxu0 %v1279
    %v1368 = vpop.f32.mrf.mxu0
    %v1369 = vadd.f32 %v1356, %v1368
    %v1370 = vpop.f32.mrf.mxu0
    %1371 = vdwg.mxu0
    %1372 = vmatpush.bf16.msra.mxu0 %v914
    %1373 = vmatpush.bf16.msra.mxu0 %v910
    %1374 = vmatpush.bf16.msra.mxu0 %v906
    %1375 = vmatpush.bf16.msra.mxu0 %v902
    %1376 = vmatpush.bf16.msra.mxu0 %v898
    %1377 = vmatpush.bf16.msra.mxu0 %v894
    %1378 = vmatpush.bf16.msra.mxu0 %v890
    %1379 = vmatpush.bf16.msra.mxu0 %v886
    %1380 = vmatmul.bf16.gmra.mxu0 %v84
    %v1381 = vpop.f32.mrf.mxu0
    %v1382 = vadd.f32 %v290, %v1381
    %v1383 = vpop.f32.mrf.mxu0
    %1384 = vdwg.mxu0
    %1385 = vmatpush.bf16.msra.mxu0 %v946
    %1386 = vmatpush.bf16.msra.mxu0 %v942
    %1387 = vmatpush.bf16.msra.mxu0 %v938
    %1388 = vmatpush.bf16.msra.mxu0 %v934
    %1389 = vmatpush.bf16.msra.mxu0 %v930
    %1390 = vmatpush.bf16.msra.mxu0 %v926
    %1391 = vmatpush.bf16.msra.mxu0 %v922
    %1392 = vmatpush.bf16.msra.mxu0 %v918
    %1393 = vmatmul.bf16.gmra.mxu0 %v85
    %v1394 = vpop.f32.mrf.mxu0
    %v1395 = vadd.f32 %v1382, %v1394
    %v1396 = vpop.f32.mrf.mxu0
    %1397 = vdwg.mxu0
    %1398 = vmatpush.bf16.msra.mxu0 %v978
    %1399 = vmatpush.bf16.msra.mxu0 %v974
    %1400 = vmatpush.bf16.msra.mxu0 %v970
    %1401 = vmatpush.bf16.msra.mxu0 %v966
    %1402 = vmatpush.bf16.msra.mxu0 %v962
    %1403 = vmatpush.bf16.msra.mxu0 %v958
    %1404 = vmatpush.bf16.msra.mxu0 %v954
    %1405 = vmatpush.bf16.msra.mxu0 %v950
    %1406 = vmatmul.bf16.gmra.mxu0 %v86
    %v1407 = vpop.f32.mrf.mxu0
    %v1408 = vadd.f32 %v1395, %v1407
    %v1409 = vpop.f32.mrf.mxu0
    %1410 = vdwg.mxu0
    %1411 = vmatpush.bf16.msra.mxu0 %v1010
    %1412 = vmatpush.bf16.msra.mxu0 %v1006
    %1413 = vmatpush.bf16.msra.mxu0 %v1002
    %1414 = vmatpush.bf16.msra.mxu0 %v998
    %1415 = vmatpush.bf16.msra.mxu0 %v994
    %1416 = vmatpush.bf16.msra.mxu0 %v990
    %1417 = vmatpush.bf16.msra.mxu0 %v986
    %1418 = vmatpush.bf16.msra.mxu0 %v982
    %1419 = vmatmul.bf16.gmra.mxu0 %v87
    %v1420 = vpop.f32.mrf.mxu0
    %v1421 = vadd.f32 %v1408, %v1420
    %v1422 = vpop.f32.mrf.mxu0
    %1423 = vdwg.mxu0
    %1424 = vmatpush.bf16.msra.mxu0 %v1042
    %1425 = vmatpush.bf16.msra.mxu0 %v1038
    %1426 = vmatpush.bf16.msra.mxu0 %v1034
    %1427 = vmatpush.bf16.msra.mxu0 %v1030
    %1428 = vmatpush.bf16.msra.mxu0 %v1026
    %1429 = vmatpush.bf16.msra.mxu0 %v1022
    %1430 = vmatpush.bf16.msra.mxu0 %v1018
    %1431 = vmatpush.bf16.msra.mxu0 %v1014
    %1432 = vmatmul.bf16.gmra.mxu0 %v88
    %v1433 = vpop.f32.mrf.mxu0
    %v1434 = vadd.f32 %v1421, %v1433
    %v1435 = vpop.f32.mrf.mxu0
    %1436 = vdwg.mxu0
    %1437 = vmatpush.bf16.msra.mxu0 %v1074
    %1438 = vmatpush.bf16.msra.mxu0 %v1070
    %1439 = vmatpush.bf16.msra.mxu0 %v1066
    %1440 = vmatpush.bf16.msra.mxu0 %v1062
    %1441 = vmatpush.bf16.msra.mxu0 %v1058
    %1442 = vmatpush.bf16.msra.mxu0 %v1054
    %1443 = vmatpush.bf16.msra.mxu0 %v1050
    %1444 = vmatpush.bf16.msra.mxu0 %v1046
    %1445 = vmatmul.bf16.gmra.mxu0 %v89
    %v1446 = vpop.f32.mrf.mxu0
    %v1447 = vadd.f32 %v1434, %v1446
    %v1448 = vpop.f32.mrf.mxu0
    %1449 = vdwg.mxu0
    %1450 = vmatpush.bf16.msra.mxu0 0
    %1451 = vmatpush.bf16.msra.mxu0 0
    %1452 = vmatpush.bf16.msra.mxu0 0
    %1453 = vmatpush.bf16.msra.mxu0 0
    %1454 = vmatpush.bf16.msra.mxu0 0
    %1455 = vmatpush.bf16.msra.mxu0 0
    %1456 = vmatpush.bf16.msra.mxu0 0
    %1457 = vmatpush.bf16.msra.mxu0 %v1078
    %1458 = vmatmul.bf16.gmra.mxu0 %v1279
    %v1459 = vpop.f32.mrf.mxu0
    %v1460 = vadd.f32 %v1447, %v1459
    %v1461 = vpop.f32.mrf.mxu0
    %1462 = vdwg.mxu0
    %1463 = vmatpush.bf16.msra.mxu0 %v915
    %1464 = vmatpush.bf16.msra.mxu0 %v911
    %1465 = vmatpush.bf16.msra.mxu0 %v907
    %1466 = vmatpush.bf16.msra.mxu0 %v903
    %1467 = vmatpush.bf16.msra.mxu0 %v899
    %1468 = vmatpush.bf16.msra.mxu0 %v895
    %1469 = vmatpush.bf16.msra.mxu0 %v891
    %1470 = vmatpush.bf16.msra.mxu0 %v887
    %1471 = vmatmul.bf16.gmra.mxu0 %v84
    %v1472 = vpop.f32.mrf.mxu0
    %v1473 = vadd.f32 %v291, %v1472
    %v1474 = vpop.f32.mrf.mxu0
    %1475 = vdwg.mxu0
    %1476 = vmatpush.bf16.msra.mxu0 %v947
    %1477 = vmatpush.bf16.msra.mxu0 %v943
    %1478 = vmatpush.bf16.msra.mxu0 %v939
    %1479 = vmatpush.bf16.msra.mxu0 %v935
    %1480 = vmatpush.bf16.msra.mxu0 %v931
    %1481 = vmatpush.bf16.msra.mxu0 %v927
    %1482 = vmatpush.bf16.msra.mxu0 %v923
    %1483 = vmatpush.bf16.msra.mxu0 %v919
    %1484 = vmatmul.bf16.gmra.mxu0 %v85
    %v1485 = vpop.f32.mrf.mxu0
    %v1486 = vadd.f32 %v1473, %v1485
    %v1487 = vpop.f32.mrf.mxu0
    %1488 = vdwg.mxu0
    %1489 = vmatpush.bf16.msra.mxu0 %v979
    %1490 = vmatpush.bf16.msra.mxu0 %v975
    %1491 = vmatpush.bf16.msra.mxu0 %v971
    %1492 = vmatpush.bf16.msra.mxu0 %v967
    %1493 = vmatpush.bf16.msra.mxu0 %v963
    %1494 = vmatpush.bf16.msra.mxu0 %v959
    %1495 = vmatpush.bf16.msra.mxu0 %v955
    %1496 = vmatpush.bf16.msra.mxu0 %v951
    %1497 = vmatmul.bf16.gmra.mxu0 %v86
    %v1498 = vpop.f32.mrf.mxu0
    %v1499 = vadd.f32 %v1486, %v1498
    %v1500 = vpop.f32.mrf.mxu0
    %1501 = vdwg.mxu0
    %1502 = vmatpush.bf16.msra.mxu0 %v1011
    %1503 = vmatpush.bf16.msra.mxu0 %v1007
    %1504 = vmatpush.bf16.msra.mxu0 %v1003
    %1505 = vmatpush.bf16.msra.mxu0 %v999
    %1506 = vmatpush.bf16.msra.mxu0 %v995
    %1507 = vmatpush.bf16.msra.mxu0 %v991
    %1508 = vmatpush.bf16.msra.mxu0 %v987
    %1509 = vmatpush.bf16.msra.mxu0 %v983
    %1510 = vmatmul.bf16.gmra.mxu0 %v87
    %v1511 = vpop.f32.mrf.mxu0
    %v1512 = vadd.f32 %v1499, %v1511
    %v1513 = vpop.f32.mrf.mxu0
    %1514 = vdwg.mxu0
    %1515 = vmatpush.bf16.msra.mxu0 %v1043
    %1516 = vmatpush.bf16.msra.mxu0 %v1039
    %1517 = vmatpush.bf16.msra.mxu0 %v1035
    %1518 = vmatpush.bf16.msra.mxu0 %v1031
    %1519 = vmatpush.bf16.msra.mxu0 %v1027
    %1520 = vmatpush.bf16.msra.mxu0 %v1023
    %1521 = vmatpush.bf16.msra.mxu0 %v1019
    %1522 = vmatpush.bf16.msra.mxu0 %v1015
    %1523 = vmatmul.bf16.gmra.mxu0 %v88
    %v1524 = vpop.f32.mrf.mxu0
    %v1525 = vadd.f32 %v1512, %v1524
    %v1526 = vpop.f32.mrf.mxu0
    %1527 = vdwg.mxu0
    %1528 = vmatpush.bf16.msra.mxu0 %v1075
    %1529 = vmatpush.bf16.msra.mxu0 %v1071
    %1530 = vmatpush.bf16.msra.mxu0 %v1067
    %1531 = vmatpush.bf16.msra.mxu0 %v1063
    %1532 = vmatpush.bf16.msra.mxu0 %v1059
    %1533 = vmatpush.bf16.msra.mxu0 %v1055
    %1534 = vmatpush.bf16.msra.mxu0 %v1051
    %1535 = vmatpush.bf16.msra.mxu0 %v1047
    %1536 = vmatmul.bf16.gmra.mxu0 %v89
    %v1537 = vpop.f32.mrf.mxu0
    %v1538 = vadd.f32 %v1525, %v1537
    %v1539 = vpop.f32.mrf.mxu0
    %1540 = vdwg.mxu0
    %1541 = vmatpush.bf16.msra.mxu0 0
    %1542 = vmatpush.bf16.msra.mxu0 0
    %1543 = vmatpush.bf16.msra.mxu0 0
    %1544 = vmatpush.bf16.msra.mxu0 0
    %1545 = vmatpush.bf16.msra.mxu0 0
    %1546 = vmatpush.bf16.msra.mxu0 0
    %1547 = vmatpush.bf16.msra.mxu0 0
    %1548 = vmatpush.bf16.msra.mxu0 %v1079
    %1549 = vmatmul.bf16.gmra.mxu0 %v1279
    %v1550 = vpop.f32.mrf.mxu0
    %v1551 = vadd.f32 %v1538, %v1550
    %v1552 = vpop.f32.mrf.mxu0
    %1553 = vdwg.mxu0
    %1554 = vmatpush.bf16.msra.mxu0 %v916
    %1555 = vmatpush.bf16.msra.mxu0 %v912
    %1556 = vmatpush.bf16.msra.mxu0 %v908
    %1557 = vmatpush.bf16.msra.mxu0 %v904
    %1558 = vmatpush.bf16.msra.mxu0 %v900
    %1559 = vmatpush.bf16.msra.mxu0 %v896
    %1560 = vmatpush.bf16.msra.mxu0 %v892
    %1561 = vmatpush.bf16.msra.mxu0 %v888
    %1562 = vmatmul.bf16.gmra.mxu0 %v84
    %v1563 = vpop.f32.mrf.mxu0
    %v1564 = vadd.f32 %v292, %v1563
    %v1565 = vpop.f32.mrf.mxu0
    %1566 = vdwg.mxu0
    %1567 = vmatpush.bf16.msra.mxu0 %v948
    %1568 = vmatpush.bf16.msra.mxu0 %v944
    %1569 = vmatpush.bf16.msra.mxu0 %v940
    %1570 = vmatpush.bf16.msra.mxu0 %v936
    %1571 = vmatpush.bf16.msra.mxu0 %v932
    %1572 = vmatpush.bf16.msra.mxu0 %v928
    %1573 = vmatpush.bf16.msra.mxu0 %v924
    %1574 = vmatpush.bf16.msra.mxu0 %v920
    %1575 = vmatmul.bf16.gmra.mxu0 %v85
    %v1576 = vpop.f32.mrf.mxu0
    %v1577 = vadd.f32 %v1564, %v1576
    %v1578 = vpop.f32.mrf.mxu0
    %1579 = vdwg.mxu0
    %1580 = vmatpush.bf16.msra.mxu0 %v980
    %1581 = vmatpush.bf16.msra.mxu0 %v976
    %1582 = vmatpush.bf16.msra.mxu0 %v972
    %1583 = vmatpush.bf16.msra.mxu0 %v968
    %1584 = vmatpush.bf16.msra.mxu0 %v964
    %1585 = vmatpush.bf16.msra.mxu0 %v960
    %1586 = vmatpush.bf16.msra.mxu0 %v956
    %1587 = vmatpush.bf16.msra.mxu0 %v952
    %1588 = vmatmul.bf16.gmra.mxu0 %v86
    %v1589 = vpop.f32.mrf.mxu0
    %v1590 = vadd.f32 %v1577, %v1589
    %v1591 = vpop.f32.mrf.mxu0
    %1592 = vdwg.mxu0
    %1593 = vmatpush.bf16.msra.mxu0 %v1012
    %1594 = vmatpush.bf16.msra.mxu0 %v1008
    %1595 = vmatpush.bf16.msra.mxu0 %v1004
    %1596 = vmatpush.bf16.msra.mxu0 %v1000
    %1597 = vmatpush.bf16.msra.mxu0 %v996
    %1598 = vmatpush.bf16.msra.mxu0 %v992
    %1599 = vmatpush.bf16.msra.mxu0 %v988
    %1600 = vmatpush.bf16.msra.mxu0 %v984
    %1601 = vmatmul.bf16.gmra.mxu0 %v87
    %v1602 = vpop.f32.mrf.mxu0
    %v1603 = vadd.f32 %v1590, %v1602
    %v1604 = vpop.f32.mrf.mxu0
    %1605 = vdwg.mxu0
    %1606 = vmatpush.bf16.msra.mxu0 %v1044
    %1607 = vmatpush.bf16.msra.mxu0 %v1040
    %1608 = vmatpush.bf16.msra.mxu0 %v1036
    %1609 = vmatpush.bf16.msra.mxu0 %v1032
    %1610 = vmatpush.bf16.msra.mxu0 %v1028
    %1611 = vmatpush.bf16.msra.mxu0 %v1024
    %1612 = vmatpush.bf16.msra.mxu0 %v1020
    %1613 = vmatpush.bf16.msra.mxu0 %v1016
    %1614 = vmatmul.bf16.gmra.mxu0 %v88
    %v1615 = vpop.f32.mrf.mxu0
    %v1616 = vadd.f32 %v1603, %v1615
    %v1617 = vpop.f32.mrf.mxu0
    %1618 = vdwg.mxu0
    %1619 = vmatpush.bf16.msra.mxu0 %v1076
    %1620 = vmatpush.bf16.msra.mxu0 %v1072
    %1621 = vmatpush.bf16.msra.mxu0 %v1068
    %1622 = vmatpush.bf16.msra.mxu0 %v1064
    %1623 = vmatpush.bf16.msra.mxu0 %v1060
    %1624 = vmatpush.bf16.msra.mxu0 %v1056
    %1625 = vmatpush.bf16.msra.mxu0 %v1052
    %1626 = vmatpush.bf16.msra.mxu0 %v1048
    %1627 = vmatmul.bf16.gmra.mxu0 %v89
    %v1628 = vpop.f32.mrf.mxu0
    %v1629 = vadd.f32 %v1616, %v1628
    %v1630 = vpop.f32.mrf.mxu0
    %1631 = vdwg.mxu0
    %1632 = vmatpush.bf16.msra.mxu0 0
    %1633 = vmatpush.bf16.msra.mxu0 0
    %1634 = vmatpush.bf16.msra.mxu0 0
    %1635 = vmatpush.bf16.msra.mxu0 0
    %1636 = vmatpush.bf16.msra.mxu0 0
    %1637 = vmatpush.bf16.msra.mxu0 0
    %1638 = vmatpush.bf16.msra.mxu0 0
    %1639 = vmatpush.bf16.msra.mxu0 %v1080
    %1640 = vmatmul.bf16.gmra.mxu0 %v1279
    %v1641 = vpop.f32.mrf.mxu0
    %v1642 = vadd.f32 %v1629, %v1641
    %v1643 = vpop.f32.mrf.mxu0
    %1644 = vdwg.mxu0
    %v1645 = vmul.f32 %v1369, 0.1
    %v1646 = vmul.f32 %v1460, 0.1
    %v1647 = vmul.f32 %v1551, 0.1
    %v1648 = vmul.f32 %v1642, 0.1
    %v1649 = vmax.f32 %v1369, %v1645
    %v1650 = vmax.f32 %v1460, %v1646
    %v1651 = vmax.f32 %v1551, %v1647
    %v1652 = vmax.f32 %v1642, %v1648
    %v1653 = vld [vmem:[%s3] sm:$0xf]
    %v1655 = vperm.slane %v1653, 0
    %v1656 = vperm.slane %v1653, 1
    %v1657 = vperm.slane %v1653, 2
    %v1658 = vperm.slane %v1653, 3
    %v1663 = vmul.f32 %v1649, %v1655
    %v1664 = vmul.f32 %v1650, %v1656
    %v1665 = vmul.f32 %v1651, %v1657
    %v1666 = vmul.f32 %v1652, %v1658
    %v1667 = vadd.f32 %v1663, %v1664
    %v1668 = vadd.f32 %v1667, %v1665
    %v1669 = vadd.f32 %v1668, %v1666
    %1670 = vadd.xlane.f32.xlu0 %v1669
    %v1671 = vpop.xlane.xlu0 %1670
    %v1672 = vld [vmem:[#allocation2] sm:$0x1]
    %v1674 = vperm.slane %v1672, 0
    %v1676 = vadd.f32 %v1671, %v1674
    %v1677 = vsub.f32 0.0, %v1676
    %v1678 = vmul.f32 %v1677, 1.442695
    %v1679 = vpow.pop %v1678
    %v1680 = vadd.f32 %v1679, 1.0
    %v1681 = vrcp.pop %v1680
    %vm1682 = vcmask 7168
    %1683 = vst.msk [vmem:[#allocation5] sm:$0xff] %vm1682, %v1681
    // Predicated region
    $region26: #{discriminator_forward.1} parent=1 // pred_check
      _
    $region27: #{discriminator_forward.1} parent=1 // pred_check_branch
      %1685 = sbr.rel (0) target = $region29
    $region28: #{discriminator_forward.1} parent=1 // pred_region
      // Predicated region
      $region30: #{discriminator_forward.1} parent=28 // pred_check
        _
      $region31: #{discriminator_forward.1} parent=28 // pred_check_branch
        %1687 = sbr.rel (0) target = $region33
      $region32: #{discriminator_forward.1} parent=28 // pred_region
        // Predicated region
        $region34: #{discriminator_forward.1} parent=32 // pred_check
          _
        $region35: #{discriminator_forward.1} parent=32 // pred_check_branch
          %1689 = sbr.rel target = $region37
        $region36: #{discriminator_forward.1} parent=32 // pred_region
          // Predicated region
          $region49: #{discriminator_forward.1} parent=36 // pred_check
            _
          $region50: #{discriminator_forward.1} parent=36 // pred_check_branch
            %1705 = sbr.rel (0) target = $region52
          $region51: #{discriminator_forward.1} parent=36 // pred_region
            %s1707 = ssub.s32 4, 1
            loop: start=0, step=1, limit=1
            $region53: #{discriminator_forward.1} parent=51 // loop_pre_header
              _
            $region54: #{discriminator_forward.1} parent=51 // loop_header
              %s1709 = sphi 0, %s1713
              %p1710 = scmp.ge.s32.totalorder %s1709, 1
              %s1714 = sphi [#allocation5], [#allocation5]
              %s1715 = sphi %s5, %s5
            $region55: #{discriminator_forward.1} parent=51 // loop_header_branch
              %1712 = sbr.rel (%p1710) target = $region59
            $region56: #{discriminator_forward.1} parent=51 // loop_body
              %v1716 = vld [vmem:[%s1714] sm:%s1707]
              %1717 = vst [vmem:[%s1715] sm:%s1707] %v1716
            $region57: #{discriminator_forward.1} parent=51 // loop_footer
              %s1713 = sadd.s32 1, %s1709
            $region58: #{discriminator_forward.1} parent=51 // loop_footer_branch
              %1708 = sbr.rel target = $region54
            $region59: #{discriminator_forward.1} parent=51 // loop_exit
              _
          $region52: #{discriminator_forward.1} parent=36 // pred_fallthru
            _
        $region37: #{discriminator_forward.1} parent=32 // pred_fallthru
          _
        // Predicated region
        $region38: #{discriminator_forward.1} parent=32 // pred_check
          _
        $region39: #{discriminator_forward.1} parent=32 // pred_check_branch
          %1691 = sbr.rel (0) target = $region41
        $region40: #{discriminator_forward.1} parent=32 // pred_region
          %s1693 = ssub.s32 4, 1
          loop: start=0, step=1, limit=1
          $region42: #{discriminator_forward.1} parent=40 // loop_pre_header
            _
          $region43: #{discriminator_forward.1} parent=40 // loop_header
            %s1695 = sphi 0, %s1699
            %p1696 = scmp.ge.s32.totalorder %s1695, 1
            %s1700 = sphi [#allocation5], [#allocation5]
            %s1701 = sphi %s5, %s5
          $region44: #{discriminator_forward.1} parent=40 // loop_header_branch
            %1698 = sbr.rel (%p1696) target = $region48
          $region45: #{discriminator_forward.1} parent=40 // loop_body
            %v1702 = vld [vmem:[%s1700] sm:%s1693]
            %1703 = vst [vmem:[%s1701] sm:%s1693] %v1702
          $region46: #{discriminator_forward.1} parent=40 // loop_footer
            %s1699 = sadd.s32 1, %s1695
          $region47: #{discriminator_forward.1} parent=40 // loop_footer_branch
            %1694 = sbr.rel target = $region43
          $region48: #{discriminator_forward.1} parent=40 // loop_exit
            _
        $region41: #{discriminator_forward.1} parent=32 // pred_fallthru
          _
      $region33: #{discriminator_forward.1} parent=28 // pred_fallthru
        _
      %1718 = vnop
    $region29: #{discriminator_forward.1} parent=1 // pred_fallthru
      _
    // Predicated region
    $region60: #{discriminator_forward.1} parent=1 // pred_check
      _
    $region61: #{discriminator_forward.1} parent=1 // pred_check_branch
      %1720 = sbr.rel (0) target = $region63
    $region62: #{discriminator_forward.1} parent=1 // pred_region
      _
    $region63: #{discriminator_forward.1} parent=1 // pred_fallthru
      _
    %1721 = vsyncpa [#allocation4], 1

</llo_original>
